<compile_context>
chip_gen: v5e
topology: v5e:2x2
jax: 0.10.0
libtpu: 0.0.40
codegen_flags: <defaults>
</compile_context>

<pallas_src>
import functools

import jax
import jax.numpy as jnp
from jax.experimental import pallas as pl
from jax.experimental.pallas import tpu as pltpu

LEAKY_SLOPE = 0.01   # torch.nn.LeakyReLU default
BN_EPS = 1e-5        # torch BatchNorm1d default


def _leaky_relu(x):
    return jnp.where(x >= 0, x, LEAKY_SLOPE * x)


def gated_gcn_kernel(x_ref, ea_ref, src_ref, dst_ref, pool_ref,
                     wnode_ref, bnode_ref, wedge_ref, wc_ref, bc_ref,
                     out_ref):
    H = wnode_ref.shape[1]            # hidden channels (wnode is [3, H, 4H])

    x = x_ref[...]                                        # [N, H] (layer-0 input zero-padded)
    src_oh = src_ref[...].astype(jnp.float32)             # [E, N]
    dst_oh = dst_ref[...].astype(jnp.float32)             # [E, N]

    # all three layers' edge embeddings in one matmul: [E, edge_dim] x [edge_dim, 3H]
    e_all = jnp.dot(ea_ref[...], wedge_ref[...], preferred_element_type=jnp.float32)
    e2_all = e_all + e_all                                 # edge term hits both k_i and q_j

    h = x  # dropout: eval-mode identity
    for l in range(3):
        # lazy per-layer parameter loads (static index -> plain slab load)
        wnode = wnode_ref[l]          # [H, 4H]  columns = [Wk | Wq | Wv | Wskip]  (BN-folded)
        bnode = bnode_ref[l]          # [1, 4H]  columns = [bk | bq | bv | conv_bias] (BN-folded)

        # fused node projections: one MXU pass, full 128-lane output width
        kqvs = jnp.dot(h, wnode, preferred_element_type=jnp.float32) + bnode  # [N, 4H]
        k = kqvs[:, 0:H]
        qv = kqvs[:, H:3 * H]                                                 # [N, 2H] (q|v)
        skip_b = kqvs[:, 3 * H:4 * H]                                         # x Wskip + bias

        e = e_all[:, l * H:(l + 1) * H]                                       # [E, H]
        e2 = e2_all[:, l * H:(l + 1) * H]

        # per-edge gathers as one-hot matmuls (q and v fused into one gather)
        k_i = jnp.dot(dst_oh, k, preferred_element_type=jnp.float32)          # [E, H]
        qv_j = jnp.dot(src_oh, qv, preferred_element_type=jnp.float32)        # [E, 2H]
        q_j = qv_j[:, 0:H]
        v_j = qv_j[:, H:2 * H]

        gate = jax.nn.sigmoid(k_i + q_j + e2)
        msg = gate * (v_j + e)                                                # [E, H]

        # scatter-add over destination nodes: contract over edge axis of dst_oh
        agg = jax.lax.dot_general(dst_oh, msg,
                                  dimension_numbers=(((0,), (0,)), ((), ())),
                                  preferred_element_type=jnp.float32)         # [N, H]

        h = _leaky_relu(agg + skip_b)
        # BatchNorm (eval) affine is folded host-side into the next linear, so the
        # kernel carries the pre-BN activations between layers.

    # global_mean_pool over graphs: pool_op rows are one_hot(batch).T / |graph|
    pooled = jnp.dot(pool_ref[...], h, preferred_element_type=jnp.float32)    # [B, H]

    # dropout: eval-mode identity; classifier (BN3 folded into wc/bc)
    out_ref[...] = (jnp.dot(pooled, wc_ref[...], preferred_element_type=jnp.float32)
                    + bc_ref[...])


def init_params(key, in_channels, hidden, num_classes, edge_dim):
    """Deterministic synthetic parameters (PyTorch-Linear-style uniform init)."""
    kiter = iter(jax.random.split(key, 64))
    nk = lambda: next(kiter)

    def lin_w(fan_in, fan_out):
        bound = 1.0 / float(fan_in) ** 0.5
        return jax.random.uniform(nk(), (fan_in, fan_out), jnp.float32, -bound, bound)

    def lin_b(fan_in, fan_out):
        bound = 1.0 / float(fan_in) ** 0.5
        return jax.random.uniform(nk(), (1, fan_out), jnp.float32, -bound, bound)

    params = []
    cin = in_channels
    for _ in range(3):
        params += [
            lin_w(cin, hidden), lin_b(cin, hidden),   # lin_key
            lin_w(cin, hidden), lin_b(cin, hidden),   # lin_query
            lin_w(cin, hidden), lin_b(cin, hidden),   # lin_value
            lin_w(edge_dim, hidden),                  # lin_edge (no bias)
            lin_w(cin, hidden),                       # lin_skip (no bias)
            lin_b(cin, hidden),                       # conv bias
        ]
        params += [
            1.0 + 0.1 * jax.random.normal(nk(), (1, hidden), jnp.float32),       # gamma
            0.1 * jax.random.normal(nk(), (1, hidden), jnp.float32),             # beta
            0.1 * jax.random.normal(nk(), (1, hidden), jnp.float32),             # running_mean
            1.0 + 0.1 * jnp.abs(jax.random.normal(nk(), (1, hidden), jnp.float32)),  # running_var
        ]
        cin = hidden
    params += [lin_w(hidden, num_classes), lin_b(hidden, num_classes)]  # classify
    return params


def _pack_params(params, in_channels, hidden):
    """Pack 41 PyTorch-style param arrays into 5 stacked kernel inputs.

    The eval-mode BatchNorm affine of layer l is folded into the linear that
    consumes it (layer l+1's stacked node weights, or the classifier for l=3):
        (h*scale + shift) @ W + b  ==  h @ (scale^T * W) + (shift @ W + b)
    """
    wnode_l, bnode_l, wedge_l = [], [], []
    idx = 0
    cin = in_channels
    pending = None   # (scale, shift) of the previous layer's BatchNorm
    for _ in range(3):
        wk, bk, wq, bq, wv, bv, we, ws, bias = params[idx:idx + 9]
        idx += 9
        gamma, beta, rmean, rvar = params[idx:idx + 4]
        idx += 4
        wn = jnp.concatenate([wk, wq, wv, ws], axis=1)              # [cin, 4H]
        bn = jnp.concatenate([bk, bq, bv, bias], axis=1)            # [1, 4H]
        if pending is not None:                                     # fold previous BN
            scale, shift = pending
            bn = bn + shift @ wn                                    # [1,H] @ [H,4H]
            wn = scale.T * wn                                       # [H,1] * [H,4H]
        if cin < hidden:                                            # pad layer-0 input dim
            wn = jnp.pad(wn, ((0, hidden - cin), (0, 0)))
        wnode_l.append(wn)
        bnode_l.append(bn)
        wedge_l.append(we)                                          # [edge_dim, H]
        bn_scale = gamma * jax.lax.rsqrt(rvar + BN_EPS)             # BN eval affine
        bn_shift = beta - rmean * bn_scale
        pending = (bn_scale, bn_shift)
        cin = hidden
    wc, bc = params[idx:idx + 2]
    scale, shift = pending                                          # fold BN3 into classifier
    bc = bc + shift @ wc
    wc = scale.T * wc
    return (jnp.stack(wnode_l),                  # [3, H, 4H]
            jnp.stack(bnode_l),                  # [3, 1, 4H]
            jnp.concatenate(wedge_l, axis=1),    # [edge_dim, 3H]
            wc, bc)                              # [H, num_classes], [1, num_classes]


@functools.partial(jax.jit, static_argnames=("num_graphs", "num_classes"))
def gated_gcn_forward(x, edge_index, edge_attr, batch, params,
                      num_graphs, num_classes):
    n_nodes, in_channels = x.shape
    hidden = params[6].shape[1]          # lin_edge weight is [edge_dim, hidden]
    assert in_channels <= hidden, "layer-0 input padding assumes in_channels <= hidden"
    src = edge_index[0]
    dst = edge_index[1]

    # glue: dense one-hot operators (bf16: exact for 0/1, halves DMA bytes)
    src_oh = jax.nn.one_hot(src, n_nodes, dtype=jnp.bfloat16)          # [E, N]
    dst_oh = jax.nn.one_hot(dst, n_nodes, dtype=jnp.bfloat16)          # [E, N]
    batch_oh = jnp.transpose(
        jax.nn.one_hot(batch, num_graphs, dtype=jnp.float32))          # [B, N]
    counts = jnp.sum(batch_oh, axis=1, keepdims=True)                  # [B, 1]
    pool_op = batch_oh / jnp.maximum(counts, 1.0)                      # mean-pool operator

    # zero-pad node features to hidden width so all three layers share one weight shape
    x_pad = jnp.pad(x.astype(jnp.float32),
                    ((0, 0), (0, hidden - in_channels)))               # [N, H]

    wnode, bnode, wedge, wc, bc = _pack_params(params, in_channels, hidden)

    inputs = [x_pad, edge_attr.astype(jnp.float32), src_oh, dst_oh, pool_op,
              wnode, bnode, wedge, wc, bc]

    vmem_spec = pl.BlockSpec(memory_space=pltpu.MemorySpace.VMEM)
    out = pl.pallas_call(
        gated_gcn_kernel,
        out_shape=jax.ShapeDtypeStruct((num_graphs, num_classes), jnp.float32),
        in_specs=[vmem_spec] * len(inputs),
        out_specs=vmem_spec,
    )(*inputs)
    # torch: x.squeeze() is a no-op for [B>1, C>1]; the B==1 branch re-adds the
    # leading dim, so [B, num_classes] is always the returned shape.
    return out


def gated_gcn_reference(x, edge_index, edge_attr, batch, params, num_graphs):
    """Pure-JAX eval-mode reference mirroring the PyTorch module (unfolded params)."""
    src, dst = edge_index[0], edge_index[1]
    h = x.astype(jnp.float32)
    idx = 0
    for _ in range(3):
        wk, bk, wq, bq, wv, bv, we, ws, bias = params[idx:idx + 9]
        idx += 9
        gamma, beta, rmean, rvar = params[idx:idx + 4]
        idx += 4
        k = h @ wk + bk
        q = h @ wq + bq
        v = h @ wv + bv
        e = edge_attr @ we
        gate = jax.nn.sigmoid((k[dst] + e) + (q[src] + e))
        msg = gate * (v[src] + e)
        agg = jnp.zeros((h.shape[0], k.shape[1]), jnp.float32).at[dst].add(msg)
        h = agg + h @ ws + bias
        h = jnp.where(h >= 0, h, LEAKY_SLOPE * h)
        scale = gamma * jax.lax.rsqrt(rvar + BN_EPS)
        shift = beta - rmean * scale
        h = h * scale + shift
    wc, bc = params[idx:idx + 2]
    seg_sum = jnp.zeros((num_graphs, h.shape[1]), jnp.float32).at[batch].add(h)
    counts = jnp.zeros((num_graphs, 1), jnp.float32).at[batch].add(1.0)
    pooled = seg_sum / jnp.maximum(counts, 1.0)
    return pooled @ wc + bc


if __name__ == "__main__":
    in_channels, hidden, num_classes, edge_dim = 8, 32, 5, 3
    n_nodes, n_edges, n_graphs = 16, 48, 2

    key = jax.random.PRNGKey(0)
    k_x, k_src, k_dst, k_ea, k_par = jax.random.split(key, 5)

    x = jax.random.normal(k_x, (n_nodes, in_channels), jnp.float32)
    src = jax.random.randint(k_src, (n_edges,), 0, n_nodes, dtype=jnp.int32)
    dst = jax.random.randint(k_dst, (n_edges,), 0, n_nodes, dtype=jnp.int32)
    edge_index = jnp.stack([src, dst], axis=0)                 # [2, E]
    edge_attr = jax.random.normal(k_ea, (n_edges, edge_dim), jnp.float32)
    batch = jnp.concatenate([
        jnp.zeros((n_nodes // 2,), jnp.int32),
        jnp.ones((n_nodes - n_nodes // 2,), jnp.int32),
    ])                                                          # [N]

    params = init_params(k_par, in_channels, hidden, num_classes, edge_dim)

    out = gated_gcn_forward(x, edge_index, edge_attr, batch, params,
                            num_graphs=n_graphs, num_classes=num_classes)
    jax.block_until_ready(out)
    assert out.shape == (n_graphs, num_classes)
    assert jnp.all(jnp.isfinite(out))

    # correctness check against a pure-JAX reference (tolerance covers default
    # TPU matmul precision differences between the fused/folded and plain forms)
    ref = gated_gcn_reference(x, edge_index, edge_attr, batch, params, n_graphs)
    scale = jnp.maximum(1.0, jnp.max(jnp.abs(ref)))
    rel_err = float(jnp.max(jnp.abs(out - ref)) / scale)
    assert rel_err < 1e-2, f"kernel/reference mismatch: rel_err={rel_err}"

    print("KERNEL_OK")
</pallas_src>

<mosaic_0001>
module attributes {stable_mosaic.version = 11 : i64} {
  func.func @gated_gcn_kernel(%arg0: memref<16x32xf32, #tpu.memory_space<vmem>>, %arg1: memref<48x3xf32, #tpu.memory_space<vmem>>, %arg2: memref<48x16xbf16, #tpu.memory_space<vmem>>, %arg3: memref<48x16xbf16, #tpu.memory_space<vmem>>, %arg4: memref<2x16xf32, #tpu.memory_space<vmem>>, %arg5: memref<3x32x128xf32, #tpu.memory_space<vmem>>, %arg6: memref<3x1x128xf32, #tpu.memory_space<vmem>>, %arg7: memref<3x96xf32, #tpu.memory_space<vmem>>, %arg8: memref<32x5xf32, #tpu.memory_space<vmem>>, %arg9: memref<1x5xf32, #tpu.memory_space<vmem>>, %arg10: memref<2x5xf32, #tpu.memory_space<vmem>>) attributes {dimension_semantics = [], scalar_prefetch = 0 : i64, scratch_operands = 0 : i64, tpu.core_type = #tpu.core_type<tc>} {
    %c0 = arith.constant 0 : index
    %c0_0 = arith.constant 0 : index
    %0 = vector.load %arg0[%c0, %c0_0] : memref<16x32xf32, #tpu.memory_space<vmem>>, vector<16x32xf32>
    %c0_1 = arith.constant 0 : index
    %c0_2 = arith.constant 0 : index
    %1 = vector.load %arg2[%c0_1, %c0_2] : memref<48x16xbf16, #tpu.memory_space<vmem>>, vector<48x16xbf16>
    %2 = arith.extf %1 : vector<48x16xbf16> to vector<48x16xf32>
    %c0_3 = arith.constant 0 : index
    %c0_4 = arith.constant 0 : index
    %3 = vector.load %arg3[%c0_3, %c0_4] : memref<48x16xbf16, #tpu.memory_space<vmem>>, vector<48x16xbf16>
    %4 = arith.extf %3 : vector<48x16xbf16> to vector<48x16xf32>
    %c0_5 = arith.constant 0 : index
    %c0_6 = arith.constant 0 : index
    %5 = vector.load %arg1[%c0_5, %c0_6] : memref<48x3xf32, #tpu.memory_space<vmem>>, vector<48x3xf32>
    %c0_7 = arith.constant 0 : index
    %c0_8 = arith.constant 0 : index
    %6 = vector.load %arg7[%c0_7, %c0_8] : memref<3x96xf32, #tpu.memory_space<vmem>>, vector<3x96xf32>
    %cst = arith.constant dense<0.000000e+00> : vector<48x96xf32>
    %7 = tpu.matmul %5, %6, %cst {dimension_numbers = #tpu.dot_dimension_numbers<[1], [0], [0], [1], [0, 0, 1, 1], [], []>} : vector<48x3xf32>, vector<3x96xf32>, vector<48x96xf32> -> vector<48x96xf32>
    %8 = arith.addf %7, %7 : vector<48x96xf32>
    %c0_9 = arith.constant 0 : index
    %c0_10 = arith.constant 0 : index
    %c0_11 = arith.constant 0 : index
    %9 = vector.load %arg5[%c0_9, %c0_10, %c0_11] : memref<3x32x128xf32, #tpu.memory_space<vmem>>, vector<1x32x128xf32>
    %10 = vector.shape_cast %9 : vector<1x32x128xf32> to vector<32x128xf32>
    %c0_12 = arith.constant 0 : index
    %c0_13 = arith.constant 0 : index
    %c0_14 = arith.constant 0 : index
    %11 = vector.load %arg6[%c0_12, %c0_13, %c0_14] : memref<3x1x128xf32, #tpu.memory_space<vmem>>, vector<1x1x128xf32>
    %12 = vector.shape_cast %11 : vector<1x1x128xf32> to vector<1x128xf32>
    %cst_15 = arith.constant dense<0.000000e+00> : vector<16x128xf32>
    %13 = tpu.matmul %0, %10, %cst_15 {dimension_numbers = #tpu.dot_dimension_numbers<[1], [0], [0], [1], [0, 0, 1, 1], [], []>} : vector<16x32xf32>, vector<32x128xf32>, vector<16x128xf32> -> vector<16x128xf32>
    %14 = vector.broadcast %12 : vector<1x128xf32> to vector<16x128xf32>
    %15 = arith.addf %13, %14 : vector<16x128xf32>
    %16 = vector.extract_strided_slice %15 {offsets = [0, 0], sizes = [16, 32], strides = [1, 1]} : vector<16x128xf32> to vector<16x32xf32>
    %17 = vector.extract_strided_slice %15 {offsets = [0, 32], sizes = [16, 64], strides = [1, 1]} : vector<16x128xf32> to vector<16x64xf32>
    %18 = vector.extract_strided_slice %15 {offsets = [0, 96], sizes = [16, 32], strides = [1, 1]} : vector<16x128xf32> to vector<16x32xf32>
    %19 = vector.extract_strided_slice %7 {offsets = [0, 0], sizes = [48, 32], strides = [1, 1]} : vector<48x96xf32> to vector<48x32xf32>
    %20 = vector.extract_strided_slice %8 {offsets = [0, 0], sizes = [48, 32], strides = [1, 1]} : vector<48x96xf32> to vector<48x32xf32>
    %cst_16 = arith.constant dense<0.000000e+00> : vector<48x32xf32>
    %21 = tpu.matmul %4, %16, %cst_16 {dimension_numbers = #tpu.dot_dimension_numbers<[1], [0], [0], [1], [0, 0, 1, 1], [], []>} : vector<48x16xf32>, vector<16x32xf32>, vector<48x32xf32> -> vector<48x32xf32>
    %cst_17 = arith.constant dense<0.000000e+00> : vector<48x64xf32>
    %22 = tpu.matmul %2, %17, %cst_17 {dimension_numbers = #tpu.dot_dimension_numbers<[1], [0], [0], [1], [0, 0, 1, 1], [], []>} : vector<48x16xf32>, vector<16x64xf32>, vector<48x64xf32> -> vector<48x64xf32>
    %23 = vector.extract_strided_slice %22 {offsets = [0, 0], sizes = [48, 32], strides = [1, 1]} : vector<48x64xf32> to vector<48x32xf32>
    %24 = vector.extract_strided_slice %22 {offsets = [0, 32], sizes = [48, 32], strides = [1, 1]} : vector<48x64xf32> to vector<48x32xf32>
    %25 = arith.addf %21, %23 : vector<48x32xf32>
    %26 = arith.addf %25, %20 : vector<48x32xf32>
    %27 = arith.negf %26 : vector<48x32xf32>
    %28 = math.exp %27 : vector<48x32xf32>
    %cst_18 = arith.constant 1.000000e+00 : f32
    %29 = vector.broadcast %cst_18 : f32 to vector<48x32xf32>
    %30 = arith.addf %29, %28 : vector<48x32xf32>
    %31 = arith.divf %29, %30 : vector<48x32xf32>
    %32 = arith.addf %24, %19 : vector<48x32xf32>
    %33 = arith.mulf %31, %32 : vector<48x32xf32>
    %cst_19 = arith.constant dense<0.000000e+00> : vector<16x32xf32>
    %34 = tpu.matmul %4, %33, %cst_19 {dimension_numbers = #tpu.dot_dimension_numbers<[0], [0], [1], [1], [0, 1, 1, 1], [], []>} : vector<48x16xf32>, vector<48x32xf32>, vector<16x32xf32> -> vector<16x32xf32>
    %35 = arith.addf %34, %18 : vector<16x32xf32>
    %cst_20 = arith.constant 0.000000e+00 : f32
    %36 = vector.broadcast %cst_20 : f32 to vector<16x32xf32>
    %37 = arith.cmpf oge, %35, %36 : vector<16x32xf32>
    %cst_21 = arith.constant 0.00999999977 : f32
    %38 = vector.broadcast %cst_21 : f32 to vector<16x32xf32>
    %39 = arith.mulf %38, %35 : vector<16x32xf32>
    %40 = arith.select %37, %35, %39 : vector<16x32xi1>, vector<16x32xf32>
    %c1 = arith.constant 1 : index
    %c0_22 = arith.constant 0 : index
    %c0_23 = arith.constant 0 : index
    %41 = vector.load %arg5[%c1, %c0_22, %c0_23] : memref<3x32x128xf32, #tpu.memory_space<vmem>>, vector<1x32x128xf32>
    %42 = vector.shape_cast %41 : vector<1x32x128xf32> to vector<32x128xf32>
    %c1_24 = arith.constant 1 : index
    %c0_25 = arith.constant 0 : index
    %c0_26 = arith.constant 0 : index
    %43 = vector.load %arg6[%c1_24, %c0_25, %c0_26] : memref<3x1x128xf32, #tpu.memory_space<vmem>>, vector<1x1x128xf32>
    %44 = vector.shape_cast %43 : vector<1x1x128xf32> to vector<1x128xf32>
    %cst_27 = arith.constant dense<0.000000e+00> : vector<16x128xf32>
    %45 = tpu.matmul %40, %42, %cst_27 {dimension_numbers = #tpu.dot_dimension_numbers<[1], [0], [0], [1], [0, 0, 1, 1], [], []>} : vector<16x32xf32>, vector<32x128xf32>, vector<16x128xf32> -> vector<16x128xf32>
    %46 = vector.broadcast %44 : vector<1x128xf32> to vector<16x128xf32>
    %47 = arith.addf %45, %46 : vector<16x128xf32>
    %48 = vector.extract_strided_slice %47 {offsets = [0, 0], sizes = [16, 32], strides = [1, 1]} : vector<16x128xf32> to vector<16x32xf32>
    %49 = vector.extract_strided_slice %47 {offsets = [0, 32], sizes = [16, 64], strides = [1, 1]} : vector<16x128xf32> to vector<16x64xf32>
    %50 = vector.extract_strided_slice %47 {offsets = [0, 96], sizes = [16, 32], strides = [1, 1]} : vector<16x128xf32> to vector<16x32xf32>
    %51 = vector.extract_strided_slice %7 {offsets = [0, 32], sizes = [48, 32], strides = [1, 1]} : vector<48x96xf32> to vector<48x32xf32>
    %52 = vector.extract_strided_slice %8 {offsets = [0, 32], sizes = [48, 32], strides = [1, 1]} : vector<48x96xf32> to vector<48x32xf32>
    %cst_28 = arith.constant dense<0.000000e+00> : vector<48x32xf32>
    %53 = tpu.matmul %4, %48, %cst_28 {dimension_numbers = #tpu.dot_dimension_numbers<[1], [0], [0], [1], [0, 0, 1, 1], [], []>} : vector<48x16xf32>, vector<16x32xf32>, vector<48x32xf32> -> vector<48x32xf32>
    %cst_29 = arith.constant dense<0.000000e+00> : vector<48x64xf32>
    %54 = tpu.matmul %2, %49, %cst_29 {dimension_numbers = #tpu.dot_dimension_numbers<[1], [0], [0], [1], [0, 0, 1, 1], [], []>} : vector<48x16xf32>, vector<16x64xf32>, vector<48x64xf32> -> vector<48x64xf32>
    %55 = vector.extract_strided_slice %54 {offsets = [0, 0], sizes = [48, 32], strides = [1, 1]} : vector<48x64xf32> to vector<48x32xf32>
    %56 = vector.extract_strided_slice %54 {offsets = [0, 32], sizes = [48, 32], strides = [1, 1]} : vector<48x64xf32> to vector<48x32xf32>
    %57 = arith.addf %53, %55 : vector<48x32xf32>
    %58 = arith.addf %57, %52 : vector<48x32xf32>
    %59 = arith.negf %58 : vector<48x32xf32>
    %60 = math.exp %59 : vector<48x32xf32>
    %cst_30 = arith.constant 1.000000e+00 : f32
    %61 = vector.broadcast %cst_30 : f32 to vector<48x32xf32>
    %62 = arith.addf %61, %60 : vector<48x32xf32>
    %63 = arith.divf %61, %62 : vector<48x32xf32>
    %64 = arith.addf %56, %51 : vector<48x32xf32>
    %65 = arith.mulf %63, %64 : vector<48x32xf32>
    %cst_31 = arith.constant dense<0.000000e+00> : vector<16x32xf32>
    %66 = tpu.matmul %4, %65, %cst_31 {dimension_numbers = #tpu.dot_dimension_numbers<[0], [0], [1], [1], [0, 1, 1, 1], [], []>} : vector<48x16xf32>, vector<48x32xf32>, vector<16x32xf32> -> vector<16x32xf32>
    %67 = arith.addf %66, %50 : vector<16x32xf32>
    %cst_32 = arith.constant 0.000000e+00 : f32
    %68 = vector.broadcast %cst_32 : f32 to vector<16x32xf32>
    %69 = arith.cmpf oge, %67, %68 : vector<16x32xf32>
    %cst_33 = arith.constant 0.00999999977 : f32
    %70 = vector.broadcast %cst_33 : f32 to vector<16x32xf32>
    %71 = arith.mulf %70, %67 : vector<16x32xf32>
    %72 = arith.select %69, %67, %71 : vector<16x32xi1>, vector<16x32xf32>
    %c2 = arith.constant 2 : index
    %c0_34 = arith.constant 0 : index
    %c0_35 = arith.constant 0 : index
    %73 = vector.load %arg5[%c2, %c0_34, %c0_35] : memref<3x32x128xf32, #tpu.memory_space<vmem>>, vector<1x32x128xf32>
    %74 = vector.shape_cast %73 : vector<1x32x128xf32> to vector<32x128xf32>
    %c2_36 = arith.constant 2 : index
    %c0_37 = arith.constant 0 : index
    %c0_38 = arith.constant 0 : index
    %75 = vector.load %arg6[%c2_36, %c0_37, %c0_38] : memref<3x1x128xf32, #tpu.memory_space<vmem>>, vector<1x1x128xf32>
    %76 = vector.shape_cast %75 : vector<1x1x128xf32> to vector<1x128xf32>
    %cst_39 = arith.constant dense<0.000000e+00> : vector<16x128xf32>
    %77 = tpu.matmul %72, %74, %cst_39 {dimension_numbers = #tpu.dot_dimension_numbers<[1], [0], [0], [1], [0, 0, 1, 1], [], []>} : vector<16x32xf32>, vector<32x128xf32>, vector<16x128xf32> -> vector<16x128xf32>
    %78 = vector.broadcast %76 : vector<1x128xf32> to vector<16x128xf32>
    %79 = arith.addf %77, %78 : vector<16x128xf32>
    %80 = vector.extract_strided_slice %79 {offsets = [0, 0], sizes = [16, 32], strides = [1, 1]} : vector<16x128xf32> to vector<16x32xf32>
    %81 = vector.extract_strided_slice %79 {offsets = [0, 32], sizes = [16, 64], strides = [1, 1]} : vector<16x128xf32> to vector<16x64xf32>
    %82 = vector.extract_strided_slice %79 {offsets = [0, 96], sizes = [16, 32], strides = [1, 1]} : vector<16x128xf32> to vector<16x32xf32>
    %83 = vector.extract_strided_slice %7 {offsets = [0, 64], sizes = [48, 32], strides = [1, 1]} : vector<48x96xf32> to vector<48x32xf32>
    %84 = vector.extract_strided_slice %8 {offsets = [0, 64], sizes = [48, 32], strides = [1, 1]} : vector<48x96xf32> to vector<48x32xf32>
    %cst_40 = arith.constant dense<0.000000e+00> : vector<48x32xf32>
    %85 = tpu.matmul %4, %80, %cst_40 {dimension_numbers = #tpu.dot_dimension_numbers<[1], [0], [0], [1], [0, 0, 1, 1], [], []>} : vector<48x16xf32>, vector<16x32xf32>, vector<48x32xf32> -> vector<48x32xf32>
    %cst_41 = arith.constant dense<0.000000e+00> : vector<48x64xf32>
    %86 = tpu.matmul %2, %81, %cst_41 {dimension_numbers = #tpu.dot_dimension_numbers<[1], [0], [0], [1], [0, 0, 1, 1], [], []>} : vector<48x16xf32>, vector<16x64xf32>, vector<48x64xf32> -> vector<48x64xf32>
    %87 = vector.extract_strided_slice %86 {offsets = [0, 0], sizes = [48, 32], strides = [1, 1]} : vector<48x64xf32> to vector<48x32xf32>
    %88 = vector.extract_strided_slice %86 {offsets = [0, 32], sizes = [48, 32], strides = [1, 1]} : vector<48x64xf32> to vector<48x32xf32>
    %89 = arith.addf %85, %87 : vector<48x32xf32>
    %90 = arith.addf %89, %84 : vector<48x32xf32>
    %91 = arith.negf %90 : vector<48x32xf32>
    %92 = math.exp %91 : vector<48x32xf32>
    %cst_42 = arith.constant 1.000000e+00 : f32
    %93 = vector.broadcast %cst_42 : f32 to vector<48x32xf32>
    %94 = arith.addf %93, %92 : vector<48x32xf32>
    %95 = arith.divf %93, %94 : vector<48x32xf32>
    %96 = arith.addf %88, %83 : vector<48x32xf32>
    %97 = arith.mulf %95, %96 : vector<48x32xf32>
    %cst_43 = arith.constant dense<0.000000e+00> : vector<16x32xf32>
    %98 = tpu.matmul %4, %97, %cst_43 {dimension_numbers = #tpu.dot_dimension_numbers<[0], [0], [1], [1], [0, 1, 1, 1], [], []>} : vector<48x16xf32>, vector<48x32xf32>, vector<16x32xf32> -> vector<16x32xf32>
    %99 = arith.addf %98, %82 : vector<16x32xf32>
    %cst_44 = arith.constant 0.000000e+00 : f32
    %100 = vector.broadcast %cst_44 : f32 to vector<16x32xf32>
    %101 = arith.cmpf oge, %99, %100 : vector<16x32xf32>
    %cst_45 = arith.constant 0.00999999977 : f32
    %102 = vector.broadcast %cst_45 : f32 to vector<16x32xf32>
    %103 = arith.mulf %102, %99 : vector<16x32xf32>
    %104 = arith.select %101, %99, %103 : vector<16x32xi1>, vector<16x32xf32>
    %c0_46 = arith.constant 0 : index
    %c0_47 = arith.constant 0 : index
    %105 = vector.load %arg4[%c0_46, %c0_47] : memref<2x16xf32, #tpu.memory_space<vmem>>, vector<2x16xf32>
    %cst_48 = arith.constant dense<0.000000e+00> : vector<2x32xf32>
    %106 = tpu.matmul %105, %104, %cst_48 {dimension_numbers = #tpu.dot_dimension_numbers<[1], [0], [0], [1], [0, 0, 1, 1], [], []>} : vector<2x16xf32>, vector<16x32xf32>, vector<2x32xf32> -> vector<2x32xf32>
    %c0_49 = arith.constant 0 : index
    %c0_50 = arith.constant 0 : index
    %107 = vector.load %arg8[%c0_49, %c0_50] : memref<32x5xf32, #tpu.memory_space<vmem>>, vector<32x5xf32>
    %cst_51 = arith.constant dense<0.000000e+00> : vector<2x5xf32>
    %108 = tpu.matmul %106, %107, %cst_51 {dimension_numbers = #tpu.dot_dimension_numbers<[1], [0], [0], [1], [0, 0, 1, 1], [], []>} : vector<2x32xf32>, vector<32x5xf32>, vector<2x5xf32> -> vector<2x5xf32>
    %c0_52 = arith.constant 0 : index
    %c0_53 = arith.constant 0 : index
    %109 = vector.load %arg9[%c0_52, %c0_53] : memref<1x5xf32, #tpu.memory_space<vmem>>, vector<1x5xf32>
    %110 = vector.broadcast %109 : vector<1x5xf32> to vector<2x5xf32>
    %111 = arith.addf %108, %110 : vector<2x5xf32>
    %c0_54 = arith.constant 0 : index
    %c0_55 = arith.constant 0 : index
    %112 = vector.load %arg10[%c0_54, %c0_55] : memref<2x5xf32, #tpu.memory_space<vmem>>, vector<2x5xf32>
    tpu.vector_store %arg10[%c0_54, %c0_55], %111 {strides = array<i32>} : memref<2x5xf32, #tpu.memory_space<vmem>>, vector<2x5xf32>,
    return
  }
}

</mosaic_0001>

<llo_original>
// kernel: gated_gcn_forward.1
$region0: #{gated_gcn_forward.1}
  #allocation0 [shape = 'u32[]', space=smem, size = 0x4, offset = 0x4, fixed_abs, tag = 'smem constant byte address 0x4 - core index']
  #allocation1 [shape = 'u32[72,128]{1,0:T(1,128)}', space=vmem, size = 0x9000, scoped, tag = 'internal scratch']
  %s0 = inlined_call_operand.vmem [shape: f32[16,32], index: 0, kind: input, shape index: {}]
  %s1 = inlined_call_operand.vmem [shape: f32[48,3], index: 1, kind: input, shape index: {}]
  %s2 = inlined_call_operand.vmem [shape: bf16[48,16], index: 2, kind: input, shape index: {}]
  %s3 = inlined_call_operand.vmem [shape: bf16[48,16], index: 3, kind: input, shape index: {}]
  %s4 = inlined_call_operand.vmem [shape: f32[2,16], index: 4, kind: input, shape index: {}]
  %s5 = inlined_call_operand.vmem [shape: f32[3,32,128], index: 5, kind: input, shape index: {}]
  %s6 = inlined_call_operand.vmem [shape: f32[3,1,128], index: 6, kind: input, shape index: {}]
  %s7 = inlined_call_operand.vmem [shape: f32[3,96], index: 7, kind: input, shape index: {}]
  %s8 = inlined_call_operand.vmem [shape: f32[32,5], index: 8, kind: input, shape index: {}]
  %s9 = inlined_call_operand.vmem [shape: f32[1,5], index: 9, kind: input, shape index: {}]
  %s10 = inlined_call_operand.hbm [shape: f32[2,5], index: 10, kind: output, shape index: {}]
  %s11 = sld [smem:[#allocation0]]
  $region50: #{gated_gcn_forward.1} parent=0
    _
  %s13 = ssub.s32 1, %s11
  %s14 = scalar_select 0, %s13, %s11
  $region1: #{gated_gcn_forward.1} parent=0
    #allocation2 [shape = 'u8[1024]{0}', space=vmem, size = 0x400, scoped, tag = 'output window, operand 0, single buffered']
    #allocation3 [shape = 's32[1]{0}', space=sflag, size = 0x4, scoped, tag = 'scoped memory for gated_gcn_forward.1']
    %15 = vsyncpa [#allocation3], 0
    // Predicated region
    $region2: #{gated_gcn_forward.1} parent=1 // pred_check
      _
    $region3: #{gated_gcn_forward.1} parent=1 // pred_check_branch
      %17 = sbr.rel (0) target = $region5
    $region4: #{gated_gcn_forward.1} parent=1 // pred_region
      _
    $region5: #{gated_gcn_forward.1} parent=1 // pred_fallthru
      _
    // Predicated region
    $region6: #{gated_gcn_forward.1} parent=1 // pred_check
      _
    $region7: #{gated_gcn_forward.1} parent=1 // pred_check_branch
      %19 = sbr.rel (0) target = $region9
    $region8: #{gated_gcn_forward.1} parent=1 // pred_region
      _
    $region9: #{gated_gcn_forward.1} parent=1 // pred_fallthru
      _
    // Predicated region
    $region10: #{gated_gcn_forward.1} parent=1 // pred_check
      _
    $region11: #{gated_gcn_forward.1} parent=1 // pred_check_branch
      %21 = sbr.rel (0) target = $region13
    $region12: #{gated_gcn_forward.1} parent=1 // pred_region
      _
    $region13: #{gated_gcn_forward.1} parent=1 // pred_fallthru
      _
    // Predicated region
    $region14: #{gated_gcn_forward.1} parent=1 // pred_check
      _
    $region15: #{gated_gcn_forward.1} parent=1 // pred_check_branch
      %23 = sbr.rel (0) target = $region17
    $region16: #{gated_gcn_forward.1} parent=1 // pred_region
      _
    $region17: #{gated_gcn_forward.1} parent=1 // pred_fallthru
      _
    // Predicated region
    $region18: #{gated_gcn_forward.1} parent=1 // pred_check
      _
    $region19: #{gated_gcn_forward.1} parent=1 // pred_check_branch
      %25 = sbr.rel (0) target = $region21
    $region20: #{gated_gcn_forward.1} parent=1 // pred_region
      _
    $region21: #{gated_gcn_forward.1} parent=1 // pred_fallthru
      _
    // Predicated region
    $region22: #{gated_gcn_forward.1} parent=1 // pred_check
      _
    $region23: #{gated_gcn_forward.1} parent=1 // pred_check_branch
      %27 = sbr.rel (0) target = $region25
    $region24: #{gated_gcn_forward.1} parent=1 // pred_region
      _
    $region25: #{gated_gcn_forward.1} parent=1 // pred_fallthru
      _
    // Predicated region
    $region26: #{gated_gcn_forward.1} parent=1 // pred_check
      _
    $region27: #{gated_gcn_forward.1} parent=1 // pred_check_branch
      %29 = sbr.rel (0) target = $region29
    $region28: #{gated_gcn_forward.1} parent=1 // pred_region
      _
    $region29: #{gated_gcn_forward.1} parent=1 // pred_fallthru
      _
    // Predicated region
    $region30: #{gated_gcn_forward.1} parent=1 // pred_check
      _
    $region31: #{gated_gcn_forward.1} parent=1 // pred_check_branch
      %31 = sbr.rel (0) target = $region33
    $region32: #{gated_gcn_forward.1} parent=1 // pred_region
      _
    $region33: #{gated_gcn_forward.1} parent=1 // pred_fallthru
      _
    // Predicated region
    $region34: #{gated_gcn_forward.1} parent=1 // pred_check
      _
    $region35: #{gated_gcn_forward.1} parent=1 // pred_check_branch
      %33 = sbr.rel (0) target = $region37
    $region36: #{gated_gcn_forward.1} parent=1 // pred_region
      _
    $region37: #{gated_gcn_forward.1} parent=1 // pred_fallthru
      _
    // Predicated region
    $region38: #{gated_gcn_forward.1} parent=1 // pred_check
      _
    $region39: #{gated_gcn_forward.1} parent=1 // pred_check_branch
      %35 = sbr.rel (0) target = $region41
    $region40: #{gated_gcn_forward.1} parent=1 // pred_region
      _
    $region41: #{gated_gcn_forward.1} parent=1 // pred_fallthru
      _
    %v36 = vld [vmem:[%s0] sm:$0xff]
    %v37 = vld [vmem:[%s0 + $0x8] sm:$0xff]
    %v38 = vld [vmem:[%s2] sm:$0xf]
    %v39 = vld [vmem:[%s2 + $0x4] sm:$0xf]
    %v40 = vld [vmem:[%s2 + $0x8] sm:$0xf]
    %v41 = vld [vmem:[%s2 + $0xc] sm:$0xf]
    %v42 = vld [vmem:[%s2 + $0x10] sm:$0xf]
    %v43 = vld [vmem:[%s2 + $0x14] sm:$0xf]
    %v44 = vunpack.c.l.bf16 %v38
    %v45 = vunpack.c.l.bf16 %v39
    %v46 = vunpack.c.l.bf16 %v40
    %v47 = vunpack.c.l.bf16 %v41
    %v48 = vunpack.c.l.bf16 %v42
    %v49 = vunpack.c.l.bf16 %v43
    %v50 = vld [vmem:[%s3] sm:$0xf]
    %v51 = vld [vmem:[%s3 + $0x4] sm:$0xf]
    %v52 = vld [vmem:[%s3 + $0x8] sm:$0xf]
    %v53 = vld [vmem:[%s3 + $0xc] sm:$0xf]
    %v54 = vld [vmem:[%s3 + $0x10] sm:$0xf]
    %v55 = vld [vmem:[%s3 + $0x14] sm:$0xf]
    %v56 = vunpack.c.l.bf16 %v50
    %v57 = vunpack.c.l.bf16 %v51
    %v58 = vunpack.c.l.bf16 %v52
    %v59 = vunpack.c.l.bf16 %v53
    %v60 = vunpack.c.l.bf16 %v54
    %v61 = vunpack.c.l.bf16 %v55
    %v62 = vld [vmem:[%s1] sm:$0xff]
    %v63 = vld [vmem:[%s1 + $0x8] sm:$0xff]
    %v64 = vld [vmem:[%s1 + $0x10] sm:$0xff]
    %v65 = vld [vmem:[%s1 + $0x18] sm:$0xff]
    %v66 = vld [vmem:[%s1 + $0x20] sm:$0xff]
    %v67 = vld [vmem:[%s1 + $0x28] sm:$0xff]
    %v68 = vld [vmem:[%s7] sm:$0x7]
    %vm69 = vcmask 23552
    %v71 = vsel %vm69, %v62, 0
    %v74 = vsel %vm69, %v63, 0
    %v77 = vsel %vm69, %v64, 0
    %v80 = vsel %vm69, %v65, 0
    %v83 = vsel %vm69, %v66, 0
    %v86 = vsel %vm69, %v67, 0
    %vm88 = vcmask 1042432
    %v90 = vsel %vm88, %v68, 0
    %92 = vmatpush.msra.mxu0 0.0
    %93 = vmatpush.msra.mxu0 0.0
    %94 = vmatpush.msra.mxu0 0.0
    %95 = vmatpush.msra.mxu0 0.0
    %96 = vmatpush.msra.mxu0 0.0
    %97 = vmatpush.msra.mxu0 0.0
    %98 = vmatpush.msra.mxu0 0.0
    %99 = vmatpush.msra.mxu0 0.0
    %100 = vmatpush.msra.mxu0 0.0
    %101 = vmatpush.msra.mxu0 0.0
    %102 = vmatpush.msra.mxu0 0.0
    %103 = vmatpush.msra.mxu0 0.0
    %104 = vmatpush.msra.mxu0 0.0
    %105 = vmatpush.msra.mxu0 0.0
    %106 = vmatpush.msra.mxu0 0.0
    %107 = vmatpush.msra.mxu0 %v90
    %108 = vmatmul.f32.gmra.mxu0 %v71
    %v109 = vpop.f32.mrf.mxu0
    %v110 = vadd.f32 0.0, %v109
    %111 = vmatmul.f32.gmra.mxu0 %v74
    %v112 = vpop.f32.mrf.mxu0
    %v113 = vadd.f32 0.0, %v112
    %114 = vmatmul.f32.gmra.mxu0 %v77
    %v115 = vpop.f32.mrf.mxu0
    %v116 = vadd.f32 0.0, %v115
    %117 = vmatmul.f32.gmra.mxu0 %v80
    %v118 = vpop.f32.mrf.mxu0
    %v119 = vadd.f32 0.0, %v118
    %120 = vmatmul.f32.gmra.mxu0 %v83
    %v121 = vpop.f32.mrf.mxu0
    %v122 = vadd.f32 0.0, %v121
    %123 = vmatmul.f32.gmra.mxu0 %v86
    %v124 = vpop.f32.mrf.mxu0
    %v125 = vadd.f32 0.0, %v124
    %126 = vdwg.mxu0
    %v127 = vadd.f32 %v110, %v110
    %v128 = vadd.f32 %v113, %v113
    %v129 = vadd.f32 %v116, %v116
    %v130 = vadd.f32 %v119, %v119
    %v131 = vadd.f32 %v122, %v122
    %v132 = vadd.f32 %v125, %v125
    %v133 = vld [vmem:[%s5] sm:$0xff]
    %v134 = vld [vmem:[%s5 + $0x8] sm:$0xff]
    %v135 = vld [vmem:[%s5 + $0x10] sm:$0xff]
    %v136 = vld [vmem:[%s5 + $0x18] sm:$0xff]
    %v137 = vld [vmem:[%s6] sm:$0x1]
    %v139 = vperm.slane %v137, 0
    %vm141 = vcmask 261120
    %v143 = vsel %vm141, %v36, 0
    %v146 = vsel %vm141, %v37, 0
    %148 = vmatpush.msra.mxu0 0.0
    %149 = vmatpush.msra.mxu0 0.0
    %150 = vmatpush.msra.mxu0 0.0
    %151 = vmatpush.msra.mxu0 0.0
    %152 = vmatpush.msra.mxu0 0.0
    %153 = vmatpush.msra.mxu0 0.0
    %154 = vmatpush.msra.mxu0 0.0
    %155 = vmatpush.msra.mxu0 0.0
    %156 = vmatpush.msra.mxu0 0.0
    %157 = vmatpush.msra.mxu0 0.0
    %158 = vmatpush.msra.mxu0 0.0
    %159 = vmatpush.msra.mxu0 0.0
    %160 = vmatpush.msra.mxu0 %v136
    %161 = vmatpush.msra.mxu0 %v135
    %162 = vmatpush.msra.mxu0 %v134
    %163 = vmatpush.msra.mxu0 %v133
    %164 = vmatmul.f32.gmra.mxu0 %v143
    %v165 = vpop.f32.mrf.mxu0
    %v166 = vadd.f32 %v139, %v165
    %167 = vmatmul.f32.gmra.mxu0 %v146
    %v168 = vpop.f32.mrf.mxu0
    %v169 = vadd.f32 %v139, %v168
    %170 = vdwg.mxu0
    %173 = vrot.lane.b32.xlu0 %v166, 96
    %v174 = vpop.permute.xlu0 %173
    %175 = vrot.lane.b32.xlu0 %v169, 96
    %v176 = vpop.permute.xlu0 %175
    %vm179 = vcmask 130048
    %v181 = vsel %vm179, %v44, 0
    %v184 = vsel %vm179, %v45, 0
    %v187 = vsel %vm179, %v46, 0
    %v190 = vsel %vm179, %v47, 0
    %v193 = vsel %vm179, %v48, 0
    %v196 = vsel %vm179, %v49, 0
    %198 = vmatpush.msra.mxu0 0.0
    %199 = vmatpush.msra.mxu0 0.0
    %200 = vmatpush.msra.mxu0 0.0
    %201 = vmatpush.msra.mxu0 0.0
    %202 = vmatpush.msra.mxu0 0.0
    %203 = vmatpush.msra.mxu0 0.0
    %204 = vmatpush.msra.mxu0 0.0
    %205 = vmatpush.msra.mxu0 0.0
    %206 = vmatpush.msra.mxu0 0.0
    %207 = vmatpush.msra.mxu0 0.0
    %208 = vmatpush.msra.mxu0 0.0
    %209 = vmatpush.msra.mxu0 0.0
    %210 = vmatpush.msra.mxu0 0.0
    %211 = vmatpush.msra.mxu0 0.0
    %212 = vmatpush.msra.mxu0 %v176
    %213 = vmatpush.msra.mxu0 %v174
    %214 = vmatmul.f32.gmra.mxu0 %v181
    %v215 = vpop.f32.mrf.mxu0
    %v216 = vadd.f32 0.0, %v215
    %217 = vmatmul.f32.gmra.mxu0 %v184
    %v218 = vpop.f32.mrf.mxu0
    %v219 = vadd.f32 0.0, %v218
    %220 = vmatmul.f32.gmra.mxu0 %v187
    %v221 = vpop.f32.mrf.mxu0
    %v222 = vadd.f32 0.0, %v221
    %223 = vmatmul.f32.gmra.mxu0 %v190
    %v224 = vpop.f32.mrf.mxu0
    %v225 = vadd.f32 0.0, %v224
    %226 = vmatmul.f32.gmra.mxu0 %v193
    %v227 = vpop.f32.mrf.mxu0
    %v228 = vadd.f32 0.0, %v227
    %229 = vmatmul.f32.gmra.mxu0 %v196
    %v230 = vpop.f32.mrf.mxu0
    %v231 = vadd.f32 0.0, %v230
    %232 = vdwg.mxu0
    %v234 = vsel %vm179, %v56, 0
    %v237 = vsel %vm179, %v57, 0
    %v240 = vsel %vm179, %v58, 0
    %v243 = vsel %vm179, %v59, 0
    %v246 = vsel %vm179, %v60, 0
    %v249 = vsel %vm179, %v61, 0
    %251 = vmatpush.msra.mxu0 0.0
    %252 = vmatpush.msra.mxu0 0.0
    %253 = vmatpush.msra.mxu0 0.0
    %254 = vmatpush.msra.mxu0 0.0
    %255 = vmatpush.msra.mxu0 0.0
    %256 = vmatpush.msra.mxu0 0.0
    %257 = vmatpush.msra.mxu0 0.0
    %258 = vmatpush.msra.mxu0 0.0
    %259 = vmatpush.msra.mxu0 0.0
    %260 = vmatpush.msra.mxu0 0.0
    %261 = vmatpush.msra.mxu0 0.0
    %262 = vmatpush.msra.mxu0 0.0
    %263 = vmatpush.msra.mxu0 0.0
    %264 = vmatpush.msra.mxu0 0.0
    %265 = vmatpush.msra.mxu0 %v169
    %266 = vmatpush.msra.mxu0 %v166
    %267 = vmatmul.f32.gmra.mxu0 %v234
    %v268 = vpop.f32.mrf.mxu0
    %v269 = vadd.f32 %v216, %v268
    %270 = vmatmul.f32.gmra.mxu0 %v237
    %v271 = vpop.f32.mrf.mxu0
    %v272 = vadd.f32 %v219, %v271
    %273 = vmatmul.f32.gmra.mxu0 %v240
    %v274 = vpop.f32.mrf.mxu0
    %v275 = vadd.f32 %v222, %v274
    %276 = vmatmul.f32.gmra.mxu0 %v243
    %v277 = vpop.f32.mrf.mxu0
    %v278 = vadd.f32 %v225, %v277
    %279 = vmatmul.f32.gmra.mxu0 %v246
    %v280 = vpop.f32.mrf.mxu0
    %v281 = vadd.f32 %v228, %v280
    %282 = vmatmul.f32.gmra.mxu0 %v249
    %v283 = vpop.f32.mrf.mxu0
    %v284 = vadd.f32 %v231, %v283
    %285 = vdwg.mxu0
    %v286 = vadd.f32 %v269, %v127
    %v287 = vadd.f32 %v272, %v128
    %v288 = vadd.f32 %v275, %v129
    %v289 = vadd.f32 %v278, %v130
    %v290 = vadd.f32 %v281, %v131
    %v291 = vadd.f32 %v284, %v132
    %v292 = vxor.u32 %v286, 2147483648
    %v293 = vxor.u32 %v287, 2147483648
    %v294 = vxor.u32 %v288, 2147483648
    %v295 = vxor.u32 %v289, 2147483648
    %v296 = vxor.u32 %v290, 2147483648
    %v297 = vxor.u32 %v291, 2147483648
    %v298 = vmul.f32 %v292, 1.442695
    %v299 = vpow.pop %v298
    %v300 = vmul.f32 %v293, 1.442695
    %v301 = vpow.pop %v300
    %v302 = vmul.f32 %v294, 1.442695
    %v303 = vpow.pop %v302
    %v304 = vmul.f32 %v295, 1.442695
    %v305 = vpow.pop %v304
    %v306 = vmul.f32 %v296, 1.442695
    %v307 = vpow.pop %v306
    %v308 = vmul.f32 %v297, 1.442695
    %v309 = vpow.pop %v308
    %v310 = vadd.f32 %v299, 1.0
    %v311 = vadd.f32 %v301, 1.0
    %v312 = vadd.f32 %v303, 1.0
    %v313 = vadd.f32 %v305, 1.0
    %v314 = vadd.f32 %v307, 1.0
    %v315 = vadd.f32 %v309, 1.0
    %v316 = vrcp.pop %v310
    %v317 = vmul.f32 %v310, %v316
    %v318 = vsub.f32 1.0, %v317
    %v319 = vmul.f32 %v316, %v318
    %v320 = vadd.f32 %v316, %v319
    %vm321 = vweird.f32 %v310
    %vm322 = vweird.f32 %v316
    %vm323 = vmor %vm321, %vm322
    %v324 = vsel %vm323, %v316, %v320
    %v325 = vand.u32 2147483647, %v310
    %vm326 = vcmp.eq.f32.partialorder %v325, 8.507059e+37
    %v327 = vand.u32 %v310, 2147483648
    %v328 = vor.u32 1.1754944e-38, %v327
    %v329 = vsel %vm326, %v328, %v324
    %v330 = vmul.f32 1.0, %v329
    %v331 = vrcp.pop %v311
    %v332 = vmul.f32 %v311, %v331
    %v333 = vsub.f32 1.0, %v332
    %v334 = vmul.f32 %v331, %v333
    %v335 = vadd.f32 %v331, %v334
    %vm336 = vweird.f32 %v311
    %vm337 = vweird.f32 %v331
    %vm338 = vmor %vm336, %vm337
    %v339 = vsel %vm338, %v331, %v335
    %v340 = vand.u32 2147483647, %v311
    %vm341 = vcmp.eq.f32.partialorder %v340, 8.507059e+37
    %v342 = vand.u32 %v311, 2147483648
    %v343 = vor.u32 1.1754944e-38, %v342
    %v344 = vsel %vm341, %v343, %v339
    %v345 = vmul.f32 1.0, %v344
    %v346 = vrcp.pop %v312
    %v347 = vmul.f32 %v312, %v346
    %v348 = vsub.f32 1.0, %v347
    %v349 = vmul.f32 %v346, %v348
    %v350 = vadd.f32 %v346, %v349
    %vm351 = vweird.f32 %v312
    %vm352 = vweird.f32 %v346
    %vm353 = vmor %vm351, %vm352
    %v354 = vsel %vm353, %v346, %v350
    %v355 = vand.u32 2147483647, %v312
    %vm356 = vcmp.eq.f32.partialorder %v355, 8.507059e+37
    %v357 = vand.u32 %v312, 2147483648
    %v358 = vor.u32 1.1754944e-38, %v357
    %v359 = vsel %vm356, %v358, %v354
    %v360 = vmul.f32 1.0, %v359
    %v361 = vrcp.pop %v313
    %v362 = vmul.f32 %v313, %v361
    %v363 = vsub.f32 1.0, %v362
    %v364 = vmul.f32 %v361, %v363
    %v365 = vadd.f32 %v361, %v364
    %vm366 = vweird.f32 %v313
    %vm367 = vweird.f32 %v361
    %vm368 = vmor %vm366, %vm367
    %v369 = vsel %vm368, %v361, %v365
    %v370 = vand.u32 2147483647, %v313
    %vm371 = vcmp.eq.f32.partialorder %v370, 8.507059e+37
    %v372 = vand.u32 %v313, 2147483648
    %v373 = vor.u32 1.1754944e-38, %v372
    %v374 = vsel %vm371, %v373, %v369
    %v375 = vmul.f32 1.0, %v374
    %v376 = vrcp.pop %v314
    %v377 = vmul.f32 %v314, %v376
    %v378 = vsub.f32 1.0, %v377
    %v379 = vmul.f32 %v376, %v378
    %v380 = vadd.f32 %v376, %v379
    %vm381 = vweird.f32 %v314
    %vm382 = vweird.f32 %v376
    %vm383 = vmor %vm381, %vm382
    %v384 = vsel %vm383, %v376, %v380
    %v385 = vand.u32 2147483647, %v314
    %vm386 = vcmp.eq.f32.partialorder %v385, 8.507059e+37
    %v387 = vand.u32 %v314, 2147483648
    %v388 = vor.u32 1.1754944e-38, %v387
    %v389 = vsel %vm386, %v388, %v384
    %v390 = vmul.f32 1.0, %v389
    %v391 = vrcp.pop %v315
    %v392 = vmul.f32 %v315, %v391
    %v393 = vsub.f32 1.0, %v392
    %v394 = vmul.f32 %v391, %v393
    %v395 = vadd.f32 %v391, %v394
    %vm396 = vweird.f32 %v315
    %vm397 = vweird.f32 %v391
    %vm398 = vmor %vm396, %vm397
    %v399 = vsel %vm398, %v391, %v395
    %v400 = vand.u32 2147483647, %v315
    %vm401 = vcmp.eq.f32.partialorder %v400, 8.507059e+37
    %v402 = vand.u32 %v315, 2147483648
    %v403 = vor.u32 1.1754944e-38, %v402
    %v404 = vsel %vm401, %v403, %v399
    %v405 = vmul.f32 1.0, %v404
    %412 = vrot.lane.b32.xlu0 %v110, 32
    %v413 = vpop.permute.xlu0 %412
    %414 = vrot.lane.b32.xlu0 %v113, 32
    %v415 = vpop.permute.xlu0 %414
    %416 = vrot.lane.b32.xlu0 %v116, 32
    %v417 = vpop.permute.xlu0 %416
    %418 = vrot.lane.b32.xlu0 %v119, 32
    %v419 = vpop.permute.xlu0 %418
    %420 = vrot.lane.b32.xlu0 %v122, 32
    %v421 = vpop.permute.xlu0 %420
    %422 = vrot.lane.b32.xlu0 %v125, 32
    %v423 = vpop.permute.xlu0 %422
    %v430 = vadd.f32 %v216, %v413
    %v431 = vadd.f32 %v219, %v415
    %v432 = vadd.f32 %v222, %v417
    %v433 = vadd.f32 %v225, %v419
    %v434 = vadd.f32 %v228, %v421
    %v435 = vadd.f32 %v231, %v423
    %442 = vrot.lane.b32.xlu0 %v430, 96
    %v443 = vpop.permute.xlu0 %442
    %444 = vrot.lane.b32.xlu0 %v431, 96
    %v445 = vpop.permute.xlu0 %444
    %446 = vrot.lane.b32.xlu0 %v432, 96
    %v447 = vpop.permute.xlu0 %446
    %448 = vrot.lane.b32.xlu0 %v433, 96
    %v449 = vpop.permute.xlu0 %448
    %450 = vrot.lane.b32.xlu0 %v434, 96
    %v451 = vpop.permute.xlu0 %450
    %452 = vrot.lane.b32.xlu0 %v435, 96
    %v453 = vpop.permute.xlu0 %452
    %v460 = vmul.f32 %v330, %v443
    %v461 = vmul.f32 %v345, %v445
    %v462 = vmul.f32 %v360, %v447
    %v463 = vmul.f32 %v375, %v449
    %v464 = vmul.f32 %v390, %v451
    %v465 = vmul.f32 %v405, %v453
    %466 = vxpose.xlu0.b32.start [1/16] %v56, 128
    %467 = vxpose.xlu0.b32.cont [2/16] %v57, 128
    %468 = vxpose.xlu0.b32.cont [3/16] %v58, 128
    %469 = vxpose.xlu0.b32.cont [4/16] %v59, 128
    %470 = vxpose.xlu0.b32.cont [5/16] %v60, 128
    %471 = vxpose.xlu0.b32.cont [6/16] %v61, 128
    %472 = vxpose.xlu0.b32.cont [7/16] 0.0, 128
    %473 = vxpose.xlu0.b32.cont [8/16] 0.0, 128
    %474 = vxpose.xlu0.b32.cont [9/16] 0.0, 128
    %475 = vxpose.xlu0.b32.cont [10/16] 0.0, 128
    %476 = vxpose.xlu0.b32.cont [11/16] 0.0, 128
    %477 = vxpose.xlu0.b32.cont [12/16] 0.0, 128
    %478 = vxpose.xlu0.b32.cont [13/16] 0.0, 128
    %479 = vxpose.xlu0.b32.cont [14/16] 0.0, 128
    %480 = vxpose.xlu0.b32.cont [15/16] 0.0, 128
    %481 = vxpose.xlu0.b32.end [16/16] 0.0, 128
    %v482 = vpop.trf.xlu0
    %v483 = vpop.trf.xlu0
    %v484 = vpop.trf.xlu0
    %v485 = vpop.trf.xlu0
    %v486 = vpop.trf.xlu0
    %v487 = vpop.trf.xlu0
    %v488 = vpop.trf.xlu0
    %v489 = vpop.trf.xlu0
    %v490 = vpop.trf.xlu0
    %v491 = vpop.trf.xlu0
    %v492 = vpop.trf.xlu0
    %v493 = vpop.trf.xlu0
    %v494 = vpop.trf.xlu0
    %v495 = vpop.trf.xlu0
    %v496 = vpop.trf.xlu0
    %v497 = vpop.trf.xlu0
    %498 = vrot.lane.b32.xlu0 %v166, 32
    %v499 = vpop.permute.xlu0 %498
    %500 = vrot.lane.b32.xlu0 %v169, 32
    %v501 = vpop.permute.xlu0 %500
    %vm504 = vcmask 392192
    %v506 = vsel %vm504, %v482, 0
    %v509 = vsel %vm504, %v483, 0
    %511 = vmatpush.msra.mxu0 0.0
    %512 = vmatpush.msra.mxu0 0.0
    %513 = vmatpush.msra.mxu0 0.0
    %514 = vmatpush.msra.mxu0 0.0
    %515 = vmatpush.msra.mxu0 0.0
    %516 = vmatpush.msra.mxu0 0.0
    %517 = vmatpush.msra.mxu0 0.0
    %518 = vmatpush.msra.mxu0 0.0
    %519 = vmatpush.msra.mxu0 0.0
    %520 = vmatpush.msra.mxu0 0.0
    %521 = vmatpush.msra.mxu0 %v465
    %522 = vmatpush.msra.mxu0 %v464
    %523 = vmatpush.msra.mxu0 %v463
    %524 = vmatpush.msra.mxu0 %v462
    %525 = vmatpush.msra.mxu0 %v461
    %526 = vmatpush.msra.mxu0 %v460
    %527 = vmatmul.f32.gmra.mxu0 %v506
    %v528 = vpop.f32.mrf.mxu0
    %v529 = vadd.f32 %v499, %v528
    %530 = vmatmul.f32.gmra.mxu0 %v509
    %v531 = vpop.f32.mrf.mxu0
    %v532 = vadd.f32 %v501, %v531
    %533 = vdwg.mxu0
    %vm534 = vcmp.ge.f32.partialorder %v529, 0.0
    %vm535 = vcmp.ge.f32.partialorder %v532, 0.0
    %v536 = vmul.f32 %v529, 0.01
    %v537 = vmul.f32 %v532, 0.01
    %v538 = vsel %vm534, %v529, %v536
    %v539 = vsel %vm535, %v532, %v537
    %s540 = scalar_lea.vmem %s5, 32
    %v541 = vld [vmem:[%s540] sm:$0xff]
    %v542 = vld [vmem:[%s540 + $0x8] sm:$0xff]
    %v543 = vld [vmem:[%s540 + $0x10] sm:$0xff]
    %v544 = vld [vmem:[%s540 + $0x18] sm:$0xff]
    %s545 = scalar_lea.vmem %s6, 1
    %v546 = vld [vmem:[%s545] sm:$0x1]
    %v548 = vperm.slane %v546, 0
    %v551 = vsel %vm141, %v538, 0
    %v554 = vsel %vm141, %v539, 0
    %556 = vmatpush.msra.mxu0 0.0
    %557 = vmatpush.msra.mxu0 0.0
    %558 = vmatpush.msra.mxu0 0.0
    %559 = vmatpush.msra.mxu0 0.0
    %560 = vmatpush.msra.mxu0 0.0
    %561 = vmatpush.msra.mxu0 0.0
    %562 = vmatpush.msra.mxu0 0.0
    %563 = vmatpush.msra.mxu0 0.0
    %564 = vmatpush.msra.mxu0 0.0
    %565 = vmatpush.msra.mxu0 0.0
    %566 = vmatpush.msra.mxu0 0.0
    %567 = vmatpush.msra.mxu0 0.0
    %568 = vmatpush.msra.mxu0 %v544
    %569 = vmatpush.msra.mxu0 %v543
    %570 = vmatpush.msra.mxu0 %v542
    %571 = vmatpush.msra.mxu0 %v541
    %572 = vmatmul.f32.gmra.mxu0 %v551
    %v573 = vpop.f32.mrf.mxu0
    %v574 = vadd.f32 %v548, %v573
    %575 = vmatmul.f32.gmra.mxu0 %v554
    %v576 = vpop.f32.mrf.mxu0
    %v577 = vadd.f32 %v548, %v576
    %578 = vdwg.mxu0
    %581 = vrot.lane.b32.xlu0 %v574, 96
    %v582 = vpop.permute.xlu0 %581
    %583 = vrot.lane.b32.xlu0 %v577, 96
    %v584 = vpop.permute.xlu0 %583
    %587 = vmatpush.msra.mxu0 0.0
    %588 = vmatpush.msra.mxu0 0.0
    %589 = vmatpush.msra.mxu0 0.0
    %590 = vmatpush.msra.mxu0 0.0
    %591 = vmatpush.msra.mxu0 0.0
    %592 = vmatpush.msra.mxu0 0.0
    %593 = vmatpush.msra.mxu0 0.0
    %594 = vmatpush.msra.mxu0 0.0
    %595 = vmatpush.msra.mxu0 0.0
    %596 = vmatpush.msra.mxu0 0.0
    %597 = vmatpush.msra.mxu0 0.0
    %598 = vmatpush.msra.mxu0 0.0
    %599 = vmatpush.msra.mxu0 0.0
    %600 = vmatpush.msra.mxu0 0.0
    %601 = vmatpush.msra.mxu0 %v584
    %602 = vmatpush.msra.mxu0 %v582
    %603 = vmatmul.f32.gmra.mxu0 %v181
    %v604 = vpop.f32.mrf.mxu0
    %v605 = vadd.f32 0.0, %v604
    %606 = vmatmul.f32.gmra.mxu0 %v184
    %v607 = vpop.f32.mrf.mxu0
    %v608 = vadd.f32 0.0, %v607
    %609 = vmatmul.f32.gmra.mxu0 %v187
    %v610 = vpop.f32.mrf.mxu0
    %v611 = vadd.f32 0.0, %v610
    %612 = vmatmul.f32.gmra.mxu0 %v190
    %v613 = vpop.f32.mrf.mxu0
    %v614 = vadd.f32 0.0, %v613
    %615 = vmatmul.f32.gmra.mxu0 %v193
    %v616 = vpop.f32.mrf.mxu0
    %v617 = vadd.f32 0.0, %v616
    %618 = vmatmul.f32.gmra.mxu0 %v196
    %v619 = vpop.f32.mrf.mxu0
    %v620 = vadd.f32 0.0, %v619
    %621 = vdwg.mxu0
    %622 = vmatpush.msra.mxu0 0.0
    %623 = vmatpush.msra.mxu0 0.0
    %624 = vmatpush.msra.mxu0 0.0
    %625 = vmatpush.msra.mxu0 0.0
    %626 = vmatpush.msra.mxu0 0.0
    %627 = vmatpush.msra.mxu0 0.0
    %628 = vmatpush.msra.mxu0 0.0
    %629 = vmatpush.msra.mxu0 0.0
    %630 = vmatpush.msra.mxu0 0.0
    %631 = vmatpush.msra.mxu0 0.0
    %632 = vmatpush.msra.mxu0 0.0
    %633 = vmatpush.msra.mxu0 0.0
    %634 = vmatpush.msra.mxu0 0.0
    %635 = vmatpush.msra.mxu0 0.0
    %636 = vmatpush.msra.mxu0 %v577
    %637 = vmatpush.msra.mxu0 %v574
    %638 = vmatmul.f32.gmra.mxu0 %v234
    %v639 = vpop.f32.mrf.mxu0
    %v640 = vadd.f32 %v605, %v639
    %641 = vmatmul.f32.gmra.mxu0 %v237
    %v642 = vpop.f32.mrf.mxu0
    %v643 = vadd.f32 %v608, %v642
    %644 = vmatmul.f32.gmra.mxu0 %v240
    %v645 = vpop.f32.mrf.mxu0
    %v646 = vadd.f32 %v611, %v645
    %647 = vmatmul.f32.gmra.mxu0 %v243
    %v648 = vpop.f32.mrf.mxu0
    %v649 = vadd.f32 %v614, %v648
    %650 = vmatmul.f32.gmra.mxu0 %v246
    %v651 = vpop.f32.mrf.mxu0
    %v652 = vadd.f32 %v617, %v651
    %653 = vmatmul.f32.gmra.mxu0 %v249
    %v654 = vpop.f32.mrf.mxu0
    %v655 = vadd.f32 %v620, %v654
    %656 = vdwg.mxu0
    %663 = vrot.lane.b32.xlu0 %v127, 96
    %v664 = vpop.permute.xlu0 %663
    %665 = vrot.lane.b32.xlu0 %v128, 96
    %v666 = vpop.permute.xlu0 %665
    %667 = vrot.lane.b32.xlu0 %v129, 96
    %v668 = vpop.permute.xlu0 %667
    %669 = vrot.lane.b32.xlu0 %v130, 96
    %v670 = vpop.permute.xlu0 %669
    %671 = vrot.lane.b32.xlu0 %v131, 96
    %v672 = vpop.permute.xlu0 %671
    %673 = vrot.lane.b32.xlu0 %v132, 96
    %v674 = vpop.permute.xlu0 %673
    %v681 = vadd.f32 %v640, %v664
    %v682 = vadd.f32 %v643, %v666
    %v683 = vadd.f32 %v646, %v668
    %v684 = vadd.f32 %v649, %v670
    %v685 = vadd.f32 %v652, %v672
    %v686 = vadd.f32 %v655, %v674
    %v687 = vxor.u32 %v681, 2147483648
    %v688 = vxor.u32 %v682, 2147483648
    %v689 = vxor.u32 %v683, 2147483648
    %v690 = vxor.u32 %v684, 2147483648
    %v691 = vxor.u32 %v685, 2147483648
    %v692 = vxor.u32 %v686, 2147483648
    %v693 = vmul.f32 %v687, 1.442695
    %v694 = vpow.pop %v693
    %v695 = vmul.f32 %v688, 1.442695
    %v696 = vpow.pop %v695
    %v697 = vmul.f32 %v689, 1.442695
    %v698 = vpow.pop %v697
    %v699 = vmul.f32 %v690, 1.442695
    %v700 = vpow.pop %v699
    %v701 = vmul.f32 %v691, 1.442695
    %v702 = vpow.pop %v701
    %v703 = vmul.f32 %v692, 1.442695
    %v704 = vpow.pop %v703
    %v705 = vadd.f32 %v694, 1.0
    %v706 = vadd.f32 %v696, 1.0
    %v707 = vadd.f32 %v698, 1.0
    %v708 = vadd.f32 %v700, 1.0
    %v709 = vadd.f32 %v702, 1.0
    %v710 = vadd.f32 %v704, 1.0
    %v711 = vrcp.pop %v705
    %v712 = vmul.f32 %v705, %v711
    %v713 = vsub.f32 1.0, %v712
    %v714 = vmul.f32 %v711, %v713
    %v715 = vadd.f32 %v711, %v714
    %vm716 = vweird.f32 %v705
    %vm717 = vweird.f32 %v711
    %vm718 = vmor %vm716, %vm717
    %v719 = vsel %vm718, %v711, %v715
    %v720 = vand.u32 2147483647, %v705
    %vm721 = vcmp.eq.f32.partialorder %v720, 8.507059e+37
    %v722 = vand.u32 %v705, 2147483648
    %v723 = vor.u32 1.1754944e-38, %v722
    %v724 = vsel %vm721, %v723, %v719
    %v725 = vmul.f32 1.0, %v724
    %v726 = vrcp.pop %v706
    %v727 = vmul.f32 %v706, %v726
    %v728 = vsub.f32 1.0, %v727
    %v729 = vmul.f32 %v726, %v728
    %v730 = vadd.f32 %v726, %v729
    %vm731 = vweird.f32 %v706
    %vm732 = vweird.f32 %v726
    %vm733 = vmor %vm731, %vm732
    %v734 = vsel %vm733, %v726, %v730
    %v735 = vand.u32 2147483647, %v706
    %vm736 = vcmp.eq.f32.partialorder %v735, 8.507059e+37
    %v737 = vand.u32 %v706, 2147483648
    %v738 = vor.u32 1.1754944e-38, %v737
    %v739 = vsel %vm736, %v738, %v734
    %v740 = vmul.f32 1.0, %v739
    %v741 = vrcp.pop %v707
    %v742 = vmul.f32 %v707, %v741
    %v743 = vsub.f32 1.0, %v742
    %v744 = vmul.f32 %v741, %v743
    %v745 = vadd.f32 %v741, %v744
    %vm746 = vweird.f32 %v707
    %vm747 = vweird.f32 %v741
    %vm748 = vmor %vm746, %vm747
    %v749 = vsel %vm748, %v741, %v745
    %v750 = vand.u32 2147483647, %v707
    %vm751 = vcmp.eq.f32.partialorder %v750, 8.507059e+37
    %v752 = vand.u32 %v707, 2147483648
    %v753 = vor.u32 1.1754944e-38, %v752
    %v754 = vsel %vm751, %v753, %v749
    %v755 = vmul.f32 1.0, %v754
    %v756 = vrcp.pop %v708
    %v757 = vmul.f32 %v708, %v756
    %v758 = vsub.f32 1.0, %v757
    %v759 = vmul.f32 %v756, %v758
    %v760 = vadd.f32 %v756, %v759
    %vm761 = vweird.f32 %v708
    %vm762 = vweird.f32 %v756
    %vm763 = vmor %vm761, %vm762
    %v764 = vsel %vm763, %v756, %v760
    %v765 = vand.u32 2147483647, %v708
    %vm766 = vcmp.eq.f32.partialorder %v765, 8.507059e+37
    %v767 = vand.u32 %v708, 2147483648
    %v768 = vor.u32 1.1754944e-38, %v767
    %v769 = vsel %vm766, %v768, %v764
    %v770 = vmul.f32 1.0, %v769
    %v771 = vrcp.pop %v709
    %v772 = vmul.f32 %v709, %v771
    %v773 = vsub.f32 1.0, %v772
    %v774 = vmul.f32 %v771, %v773
    %v775 = vadd.f32 %v771, %v774
    %vm776 = vweird.f32 %v709
    %vm777 = vweird.f32 %v771
    %vm778 = vmor %vm776, %vm777
    %v779 = vsel %vm778, %v771, %v775
    %v780 = vand.u32 2147483647, %v709
    %vm781 = vcmp.eq.f32.partialorder %v780, 8.507059e+37
    %v782 = vand.u32 %v709, 2147483648
    %v783 = vor.u32 1.1754944e-38, %v782
    %v784 = vsel %vm781, %v783, %v779
    %v785 = vmul.f32 1.0, %v784
    %v786 = vrcp.pop %v710
    %v787 = vmul.f32 %v710, %v786
    %v788 = vsub.f32 1.0, %v787
    %v789 = vmul.f32 %v786, %v788
    %v790 = vadd.f32 %v786, %v789
    %vm791 = vweird.f32 %v710
    %vm792 = vweird.f32 %v786
    %vm793 = vmor %vm791, %vm792
    %v794 = vsel %vm793, %v786, %v790
    %v795 = vand.u32 2147483647, %v710
    %vm796 = vcmp.eq.f32.partialorder %v795, 8.507059e+37
    %v797 = vand.u32 %v710, 2147483648
    %v798 = vor.u32 1.1754944e-38, %v797
    %v799 = vsel %vm796, %v798, %v794
    %v800 = vmul.f32 1.0, %v799
    %v801 = vadd.f32 %v605, %v110
    %v802 = vadd.f32 %v608, %v113
    %v803 = vadd.f32 %v611, %v116
    %v804 = vadd.f32 %v614, %v119
    %v805 = vadd.f32 %v617, %v122
    %v806 = vadd.f32 %v620, %v125
    %813 = vrot.lane.b32.xlu0 %v801, 96
    %v814 = vpop.permute.xlu0 %813
    %815 = vrot.lane.b32.xlu0 %v802, 96
    %v816 = vpop.permute.xlu0 %815
    %817 = vrot.lane.b32.xlu0 %v803, 96
    %v818 = vpop.permute.xlu0 %817
    %819 = vrot.lane.b32.xlu0 %v804, 96
    %v820 = vpop.permute.xlu0 %819
    %821 = vrot.lane.b32.xlu0 %v805, 96
    %v822 = vpop.permute.xlu0 %821
    %823 = vrot.lane.b32.xlu0 %v806, 96
    %v824 = vpop.permute.xlu0 %823
    %v831 = vmul.f32 %v725, %v814
    %v832 = vmul.f32 %v740, %v816
    %v833 = vmul.f32 %v755, %v818
    %v834 = vmul.f32 %v770, %v820
    %v835 = vmul.f32 %v785, %v822
    %v836 = vmul.f32 %v800, %v824
    %837 = vrot.lane.b32.xlu0 %v574, 32
    %v838 = vpop.permute.xlu0 %837
    %839 = vrot.lane.b32.xlu0 %v577, 32
    %v840 = vpop.permute.xlu0 %839
    %843 = vmatpush.msra.mxu0 0.0
    %844 = vmatpush.msra.mxu0 0.0
    %845 = vmatpush.msra.mxu0 0.0
    %846 = vmatpush.msra.mxu0 0.0
    %847 = vmatpush.msra.mxu0 0.0
    %848 = vmatpush.msra.mxu0 0.0
    %849 = vmatpush.msra.mxu0 0.0
    %850 = vmatpush.msra.mxu0 0.0
    %851 = vmatpush.msra.mxu0 0.0
    %852 = vmatpush.msra.mxu0 0.0
    %853 = vmatpush.msra.mxu0 %v836
    %854 = vmatpush.msra.mxu0 %v835
    %855 = vmatpush.msra.mxu0 %v834
    %856 = vmatpush.msra.mxu0 %v833
    %857 = vmatpush.msra.mxu0 %v832
    %858 = vmatpush.msra.mxu0 %v831
    %859 = vmatmul.f32.gmra.mxu0 %v506
    %v860 = vpop.f32.mrf.mxu0
    %v861 = vadd.f32 %v838, %v860
    %862 = vmatmul.f32.gmra.mxu0 %v509
    %v863 = vpop.f32.mrf.mxu0
    %v864 = vadd.f32 %v840, %v863
    %865 = vdwg.mxu0
    %vm866 = vcmp.ge.f32.partialorder %v861, 0.0
    %vm867 = vcmp.ge.f32.partialorder %v864, 0.0
    %v868 = vmul.f32 %v861, 0.01
    %v869 = vmul.f32 %v864, 0.01
    %v870 = vsel %vm866, %v861, %v868
    %v871 = vsel %vm867, %v864, %v869
    %s872 = scalar_lea.vmem %s5, 64
    %v873 = vld [vmem:[%s872] sm:$0xff]
    %v874 = vld [vmem:[%s872 + $0x8] sm:$0xff]
    %v875 = vld [vmem:[%s872 + $0x10] sm:$0xff]
    %v876 = vld [vmem:[%s872 + $0x18] sm:$0xff]
    %s877 = scalar_lea.vmem %s6, 2
    %v878 = vld [vmem:[%s877] sm:$0x1]
    %v880 = vperm.slane %v878, 0
    %v883 = vsel %vm141, %v870, 0
    %v886 = vsel %vm141, %v871, 0
    %888 = vmatpush.msra.mxu0 0.0
    %889 = vmatpush.msra.mxu0 0.0
    %890 = vmatpush.msra.mxu0 0.0
    %891 = vmatpush.msra.mxu0 0.0
    %892 = vmatpush.msra.mxu0 0.0
    %893 = vmatpush.msra.mxu0 0.0
    %894 = vmatpush.msra.mxu0 0.0
    %895 = vmatpush.msra.mxu0 0.0
    %896 = vmatpush.msra.mxu0 0.0
    %897 = vmatpush.msra.mxu0 0.0
    %898 = vmatpush.msra.mxu0 0.0
    %899 = vmatpush.msra.mxu0 0.0
    %900 = vmatpush.msra.mxu0 %v876
    %901 = vmatpush.msra.mxu0 %v875
    %902 = vmatpush.msra.mxu0 %v874
    %903 = vmatpush.msra.mxu0 %v873
    %904 = vmatmul.f32.gmra.mxu0 %v883
    %v905 = vpop.f32.mrf.mxu0
    %v906 = vadd.f32 %v880, %v905
    %907 = vmatmul.f32.gmra.mxu0 %v886
    %v908 = vpop.f32.mrf.mxu0
    %v909 = vadd.f32 %v880, %v908
    %910 = vdwg.mxu0
    %913 = vrot.lane.b32.xlu0 %v906, 96
    %v914 = vpop.permute.xlu0 %913
    %915 = vrot.lane.b32.xlu0 %v909, 96
    %v916 = vpop.permute.xlu0 %915
    %919 = vmatpush.msra.mxu0 0.0
    %920 = vmatpush.msra.mxu0 0.0
    %921 = vmatpush.msra.mxu0 0.0
    %922 = vmatpush.msra.mxu0 0.0
    %923 = vmatpush.msra.mxu0 0.0
    %924 = vmatpush.msra.mxu0 0.0
    %925 = vmatpush.msra.mxu0 0.0
    %926 = vmatpush.msra.mxu0 0.0
    %927 = vmatpush.msra.mxu0 0.0
    %928 = vmatpush.msra.mxu0 0.0
    %929 = vmatpush.msra.mxu0 0.0
    %930 = vmatpush.msra.mxu0 0.0
    %931 = vmatpush.msra.mxu0 0.0
    %932 = vmatpush.msra.mxu0 0.0
    %933 = vmatpush.msra.mxu0 %v916
    %934 = vmatpush.msra.mxu0 %v914
    %935 = vmatmul.f32.gmra.mxu0 %v181
    %v936 = vpop.f32.mrf.mxu0
    %v937 = vadd.f32 0.0, %v936
    %938 = vmatmul.f32.gmra.mxu0 %v184
    %v939 = vpop.f32.mrf.mxu0
    %v940 = vadd.f32 0.0, %v939
    %941 = vmatmul.f32.gmra.mxu0 %v187
    %v942 = vpop.f32.mrf.mxu0
    %v943 = vadd.f32 0.0, %v942
    %944 = vmatmul.f32.gmra.mxu0 %v190
    %v945 = vpop.f32.mrf.mxu0
    %v946 = vadd.f32 0.0, %v945
    %947 = vmatmul.f32.gmra.mxu0 %v193
    %v948 = vpop.f32.mrf.mxu0
    %v949 = vadd.f32 0.0, %v948
    %950 = vmatmul.f32.gmra.mxu0 %v196
    %v951 = vpop.f32.mrf.mxu0
    %v952 = vadd.f32 0.0, %v951
    %953 = vdwg.mxu0
    %954 = vmatpush.msra.mxu0 0.0
    %955 = vmatpush.msra.mxu0 0.0
    %956 = vmatpush.msra.mxu0 0.0
    %957 = vmatpush.msra.mxu0 0.0
    %958 = vmatpush.msra.mxu0 0.0
    %959 = vmatpush.msra.mxu0 0.0
    %960 = vmatpush.msra.mxu0 0.0
    %961 = vmatpush.msra.mxu0 0.0
    %962 = vmatpush.msra.mxu0 0.0
    %963 = vmatpush.msra.mxu0 0.0
    %964 = vmatpush.msra.mxu0 0.0
    %965 = vmatpush.msra.mxu0 0.0
    %966 = vmatpush.msra.mxu0 0.0
    %967 = vmatpush.msra.mxu0 0.0
    %968 = vmatpush.msra.mxu0 %v909
    %969 = vmatpush.msra.mxu0 %v906
    %970 = vmatmul.f32.gmra.mxu0 %v234
    %v971 = vpop.f32.mrf.mxu0
    %v972 = vadd.f32 %v937, %v971
    %973 = vmatmul.f32.gmra.mxu0 %v237
    %v974 = vpop.f32.mrf.mxu0
    %v975 = vadd.f32 %v940, %v974
    %976 = vmatmul.f32.gmra.mxu0 %v240
    %v977 = vpop.f32.mrf.mxu0
    %v978 = vadd.f32 %v943, %v977
    %979 = vmatmul.f32.gmra.mxu0 %v243
    %v980 = vpop.f32.mrf.mxu0
    %v981 = vadd.f32 %v946, %v980
    %982 = vmatmul.f32.gmra.mxu0 %v246
    %v983 = vpop.f32.mrf.mxu0
    %v984 = vadd.f32 %v949, %v983
    %985 = vmatmul.f32.gmra.mxu0 %v249
    %v986 = vpop.f32.mrf.mxu0
    %v987 = vadd.f32 %v952, %v986
    %988 = vdwg.mxu0
    %989 = vrot.lane.b32.xlu0 %v127, 64
    %v990 = vpop.permute.xlu0 %989
    %991 = vrot.lane.b32.xlu0 %v128, 64
    %v992 = vpop.permute.xlu0 %991
    %993 = vrot.lane.b32.xlu0 %v129, 64
    %v994 = vpop.permute.xlu0 %993
    %995 = vrot.lane.b32.xlu0 %v130, 64
    %v996 = vpop.permute.xlu0 %995
    %997 = vrot.lane.b32.xlu0 %v131, 64
    %v998 = vpop.permute.xlu0 %997
    %999 = vrot.lane.b32.xlu0 %v132, 64
    %v1000 = vpop.permute.xlu0 %999
    %v1007 = vadd.f32 %v972, %v990
    %v1008 = vadd.f32 %v975, %v992
    %v1009 = vadd.f32 %v978, %v994
    %v1010 = vadd.f32 %v981, %v996
    %v1011 = vadd.f32 %v984, %v998
    %v1012 = vadd.f32 %v987, %v1000
    %v1013 = vxor.u32 %v1007, 2147483648
    %v1014 = vxor.u32 %v1008, 2147483648
    %v1015 = vxor.u32 %v1009, 2147483648
    %v1016 = vxor.u32 %v1010, 2147483648
    %v1017 = vxor.u32 %v1011, 2147483648
    %v1018 = vxor.u32 %v1012, 2147483648
    %v1019 = vmul.f32 %v1013, 1.442695
    %v1020 = vpow.pop %v1019
    %v1021 = vmul.f32 %v1014, 1.442695
    %v1022 = vpow.pop %v1021
    %v1023 = vmul.f32 %v1015, 1.442695
    %v1024 = vpow.pop %v1023
    %v1025 = vmul.f32 %v1016, 1.442695
    %v1026 = vpow.pop %v1025
    %v1027 = vmul.f32 %v1017, 1.442695
    %v1028 = vpow.pop %v1027
    %v1029 = vmul.f32 %v1018, 1.442695
    %v1030 = vpow.pop %v1029
    %v1031 = vadd.f32 %v1020, 1.0
    %v1032 = vadd.f32 %v1022, 1.0
    %v1033 = vadd.f32 %v1024, 1.0
    %v1034 = vadd.f32 %v1026, 1.0
    %v1035 = vadd.f32 %v1028, 1.0
    %v1036 = vadd.f32 %v1030, 1.0
    %v1037 = vrcp.pop %v1031
    %v1038 = vmul.f32 %v1031, %v1037
    %v1039 = vsub.f32 1.0, %v1038
    %v1040 = vmul.f32 %v1037, %v1039
    %v1041 = vadd.f32 %v1037, %v1040
    %vm1042 = vweird.f32 %v1031
    %vm1043 = vweird.f32 %v1037
    %vm1044 = vmor %vm1042, %vm1043
    %v1045 = vsel %vm1044, %v1037, %v1041
    %v1046 = vand.u32 2147483647, %v1031
    %vm1047 = vcmp.eq.f32.partialorder %v1046, 8.507059e+37
    %v1048 = vand.u32 %v1031, 2147483648
    %v1049 = vor.u32 1.1754944e-38, %v1048
    %v1050 = vsel %vm1047, %v1049, %v1045
    %v1051 = vmul.f32 1.0, %v1050
    %v1052 = vrcp.pop %v1032
    %v1053 = vmul.f32 %v1032, %v1052
    %v1054 = vsub.f32 1.0, %v1053
    %v1055 = vmul.f32 %v1052, %v1054
    %v1056 = vadd.f32 %v1052, %v1055
    %vm1057 = vweird.f32 %v1032
    %vm1058 = vweird.f32 %v1052
    %vm1059 = vmor %vm1057, %vm1058
    %v1060 = vsel %vm1059, %v1052, %v1056
    %v1061 = vand.u32 2147483647, %v1032
    %vm1062 = vcmp.eq.f32.partialorder %v1061, 8.507059e+37
    %v1063 = vand.u32 %v1032, 2147483648
    %v1064 = vor.u32 1.1754944e-38, %v1063
    %v1065 = vsel %vm1062, %v1064, %v1060
    %v1066 = vmul.f32 1.0, %v1065
    %v1067 = vrcp.pop %v1033
    %v1068 = vmul.f32 %v1033, %v1067
    %v1069 = vsub.f32 1.0, %v1068
    %v1070 = vmul.f32 %v1067, %v1069
    %v1071 = vadd.f32 %v1067, %v1070
    %vm1072 = vweird.f32 %v1033
    %vm1073 = vweird.f32 %v1067
    %vm1074 = vmor %vm1072, %vm1073
    %v1075 = vsel %vm1074, %v1067, %v1071
    %v1076 = vand.u32 2147483647, %v1033
    %vm1077 = vcmp.eq.f32.partialorder %v1076, 8.507059e+37
    %v1078 = vand.u32 %v1033, 2147483648
    %v1079 = vor.u32 1.1754944e-38, %v1078
    %v1080 = vsel %vm1077, %v1079, %v1075
    %v1081 = vmul.f32 1.0, %v1080
    %v1082 = vrcp.pop %v1034
    %v1083 = vmul.f32 %v1034, %v1082
    %v1084 = vsub.f32 1.0, %v1083
    %v1085 = vmul.f32 %v1082, %v1084
    %v1086 = vadd.f32 %v1082, %v1085
    %vm1087 = vweird.f32 %v1034
    %vm1088 = vweird.f32 %v1082
    %vm1089 = vmor %vm1087, %vm1088
    %v1090 = vsel %vm1089, %v1082, %v1086
    %v1091 = vand.u32 2147483647, %v1034
    %vm1092 = vcmp.eq.f32.partialorder %v1091, 8.507059e+37
    %v1093 = vand.u32 %v1034, 2147483648
    %v1094 = vor.u32 1.1754944e-38, %v1093
    %v1095 = vsel %vm1092, %v1094, %v1090
    %v1096 = vmul.f32 1.0, %v1095
    %v1097 = vrcp.pop %v1035
    %v1098 = vmul.f32 %v1035, %v1097
    %v1099 = vsub.f32 1.0, %v1098
    %v1100 = vmul.f32 %v1097, %v1099
    %v1101 = vadd.f32 %v1097, %v1100
    %vm1102 = vweird.f32 %v1035
    %vm1103 = vweird.f32 %v1097
    %vm1104 = vmor %vm1102, %vm1103
    %v1105 = vsel %vm1104, %v1097, %v1101
    %v1106 = vand.u32 2147483647, %v1035
    %vm1107 = vcmp.eq.f32.partialorder %v1106, 8.507059e+37
    %v1108 = vand.u32 %v1035, 2147483648
    %v1109 = vor.u32 1.1754944e-38, %v1108
    %v1110 = vsel %vm1107, %v1109, %v1105
    %v1111 = vmul.f32 1.0, %v1110
    %v1112 = vrcp.pop %v1036
    %v1113 = vmul.f32 %v1036, %v1112
    %v1114 = vsub.f32 1.0, %v1113
    %v1115 = vmul.f32 %v1112, %v1114
    %v1116 = vadd.f32 %v1112, %v1115
    %vm1117 = vweird.f32 %v1036
    %vm1118 = vweird.f32 %v1112
    %vm1119 = vmor %vm1117, %vm1118
    %v1120 = vsel %vm1119, %v1112, %v1116
    %v1121 = vand.u32 2147483647, %v1036
    %vm1122 = vcmp.eq.f32.partialorder %v1121, 8.507059e+37
    %v1123 = vand.u32 %v1036, 2147483648
    %v1124 = vor.u32 1.1754944e-38, %v1123
    %v1125 = vsel %vm1122, %v1124, %v1120
    %v1126 = vmul.f32 1.0, %v1125
    %1127 = vrot.lane.b32.xlu0 %v110, 96
    %v1128 = vpop.permute.xlu0 %1127
    %1129 = vrot.lane.b32.xlu0 %v113, 96
    %v1130 = vpop.permute.xlu0 %1129
    %1131 = vrot.lane.b32.xlu0 %v116, 96
    %v1132 = vpop.permute.xlu0 %1131
    %1133 = vrot.lane.b32.xlu0 %v119, 96
    %v1134 = vpop.permute.xlu0 %1133
    %1135 = vrot.lane.b32.xlu0 %v122, 96
    %v1136 = vpop.permute.xlu0 %1135
    %1137 = vrot.lane.b32.xlu0 %v125, 96
    %v1138 = vpop.permute.xlu0 %1137
    %v1145 = vadd.f32 %v937, %v1128
    %v1146 = vadd.f32 %v940, %v1130
    %v1147 = vadd.f32 %v943, %v1132
    %v1148 = vadd.f32 %v946, %v1134
    %v1149 = vadd.f32 %v949, %v1136
    %v1150 = vadd.f32 %v952, %v1138
    %1157 = vrot.lane.b32.xlu0 %v1145, 96
    %v1158 = vpop.permute.xlu0 %1157
    %1159 = vrot.lane.b32.xlu0 %v1146, 96
    %v1160 = vpop.permute.xlu0 %1159
    %1161 = vrot.lane.b32.xlu0 %v1147, 96
    %v1162 = vpop.permute.xlu0 %1161
    %1163 = vrot.lane.b32.xlu0 %v1148, 96
    %v1164 = vpop.permute.xlu0 %1163
    %1165 = vrot.lane.b32.xlu0 %v1149, 96
    %v1166 = vpop.permute.xlu0 %1165
    %1167 = vrot.lane.b32.xlu0 %v1150, 96
    %v1168 = vpop.permute.xlu0 %1167
    %v1175 = vmul.f32 %v1051, %v1158
    %v1176 = vmul.f32 %v1066, %v1160
    %v1177 = vmul.f32 %v1081, %v1162
    %v1178 = vmul.f32 %v1096, %v1164
    %v1179 = vmul.f32 %v1111, %v1166
    %v1180 = vmul.f32 %v1126, %v1168
    %1181 = vrot.lane.b32.xlu0 %v906, 32
    %v1182 = vpop.permute.xlu0 %1181
    %1183 = vrot.lane.b32.xlu0 %v909, 32
    %v1184 = vpop.permute.xlu0 %1183
    %1187 = vmatpush.msra.mxu0 0.0
    %1188 = vmatpush.msra.mxu0 0.0
    %1189 = vmatpush.msra.mxu0 0.0
    %1190 = vmatpush.msra.mxu0 0.0
    %1191 = vmatpush.msra.mxu0 0.0
    %1192 = vmatpush.msra.mxu0 0.0
    %1193 = vmatpush.msra.mxu0 0.0
    %1194 = vmatpush.msra.mxu0 0.0
    %1195 = vmatpush.msra.mxu0 0.0
    %1196 = vmatpush.msra.mxu0 0.0
    %1197 = vmatpush.msra.mxu0 %v1180
    %1198 = vmatpush.msra.mxu0 %v1179
    %1199 = vmatpush.msra.mxu0 %v1178
    %1200 = vmatpush.msra.mxu0 %v1177
    %1201 = vmatpush.msra.mxu0 %v1176
    %1202 = vmatpush.msra.mxu0 %v1175
    %1203 = vmatmul.f32.gmra.mxu0 %v506
    %v1204 = vpop.f32.mrf.mxu0
    %v1205 = vadd.f32 %v1182, %v1204
    %1206 = vmatmul.f32.gmra.mxu0 %v509
    %v1207 = vpop.f32.mrf.mxu0
    %v1208 = vadd.f32 %v1184, %v1207
    %1209 = vdwg.mxu0
    %vm1210 = vcmp.ge.f32.partialorder %v1205, 0.0
    %vm1211 = vcmp.ge.f32.partialorder %v1208, 0.0
    %v1212 = vmul.f32 %v1205, 0.01
    %v1213 = vmul.f32 %v1208, 0.01
    %v1214 = vsel %vm1210, %v1205, %v1212
    %v1215 = vsel %vm1211, %v1208, %v1213
    %v1216 = vld [vmem:[%s4] sm:$0x3]
    %v1218 = vsel %vm179, %v1216, 0
    %1220 = vmatpush.msra.mxu0 0.0
    %1221 = vmatpush.msra.mxu0 0.0
    %1222 = vmatpush.msra.mxu0 0.0
    %1223 = vmatpush.msra.mxu0 0.0
    %1224 = vmatpush.msra.mxu0 0.0
    %1225 = vmatpush.msra.mxu0 0.0
    %1226 = vmatpush.msra.mxu0 0.0
    %1227 = vmatpush.msra.mxu0 0.0
    %1228 = vmatpush.msra.mxu0 0.0
    %1229 = vmatpush.msra.mxu0 0.0
    %1230 = vmatpush.msra.mxu0 0.0
    %1231 = vmatpush.msra.mxu0 0.0
    %1232 = vmatpush.msra.mxu0 0.0
    %1233 = vmatpush.msra.mxu0 0.0
    %1234 = vmatpush.msra.mxu0 %v1215
    %1235 = vmatpush.msra.mxu0 %v1214
    %1236 = vmatmul.f32.gmra.mxu0 %v1218
    %v1237 = vpop.f32.mrf.mxu0
    %v1238 = vadd.f32 0.0, %v1237
    %1239 = vdwg.mxu0
    %v1240 = vld [vmem:[%s8] sm:$0xff]
    %v1241 = vld [vmem:[%s8 + $0x8] sm:$0xff]
    %v1242 = vld [vmem:[%s8 + $0x10] sm:$0xff]
    %v1243 = vld [vmem:[%s8 + $0x18] sm:$0xff]
    %v1244 = vld [vmem:[%s9] sm:$0x1]
    %v1246 = vperm.slane %v1244, 0
    %v1249 = vsel %vm141, %v1238, 0
    %1251 = vmatpush.msra.mxu0 0.0
    %1252 = vmatpush.msra.mxu0 0.0
    %1253 = vmatpush.msra.mxu0 0.0
    %1254 = vmatpush.msra.mxu0 0.0
    %1255 = vmatpush.msra.mxu0 0.0
    %1256 = vmatpush.msra.mxu0 0.0
    %1257 = vmatpush.msra.mxu0 0.0
    %1258 = vmatpush.msra.mxu0 0.0
    %1259 = vmatpush.msra.mxu0 0.0
    %1260 = vmatpush.msra.mxu0 0.0
    %1261 = vmatpush.msra.mxu0 0.0
    %1262 = vmatpush.msra.mxu0 0.0
    %1263 = vmatpush.msra.mxu0 %v1243
    %1264 = vmatpush.msra.mxu0 %v1242
    %1265 = vmatpush.msra.mxu0 %v1241
    %1266 = vmatpush.msra.mxu0 %v1240
    %1267 = vmatmul.f32.gmra.mxu0 %v1249
    %v1268 = vpop.f32.mrf.mxu0
    %v1269 = vadd.f32 %v1246, %v1268
    %1270 = vdwg.mxu0
    %vm1271 = vcmask 33792
    %1272 = vst.msk [vmem:[#allocation2] sm:$0x3] %vm1271, %v1269
    // Predicated region
    $region42: #{gated_gcn_forward.1} parent=1 // pred_check
      _
    $region43: #{gated_gcn_forward.1} parent=1 // pred_check_branch
      %1274 = sbr.rel (0) target = $region45
    $region44: #{gated_gcn_forward.1} parent=1 // pred_region
      %1276 = vsyncadd [#allocation3], 0
      %s1278 = sshll.u32 [#allocation2], 4
      %s1279 = int_to_ptr.vmem [resolvable:$true] %s1278
      %s1280 = sshll.u32 %s10, 4
      %s1281 = int_to_ptr.hbm [resolvable:$true] %s1280
      %1283 = dma.vmem_to_hbm [thread:$0]  %s1279, 32, %s1281, [#allocation3]
    $region45: #{gated_gcn_forward.1} parent=1 // pred_fallthru
      _
    // Predicated region
    $region46: #{gated_gcn_forward.1} parent=1 // pred_check
      _
    $region47: #{gated_gcn_forward.1} parent=1 // pred_check_branch
      %1285 = sbr.rel (0) target = $region49
    $region48: #{gated_gcn_forward.1} parent=1 // pred_region
      %1287 = dma.done [#allocation3], 32
    $region49: #{gated_gcn_forward.1} parent=1 // pred_fallthru
      _
    %1288 = vsyncpa [#allocation3], 1

</llo_original>
